<compile_context>
chip_gen: v6e
topology: v6e:2x2x1
jax: 0.10.0
libtpu: 0.0.40
codegen_flags: <defaults>
</compile_context>

<pallas_src>
import functools
import math

import jax
import jax.numpy as jnp
from jax.experimental import pallas as pl
from jax.experimental.pallas import tpu as pltpu

_LN_EPS = 1e-5
_GELU_C = 0.7978845608028654  # sqrt(2/pi)


def _nbytes(shape, dtype):
    return math.prod(shape) * jnp.dtype(dtype).itemsize


def _vmem_limit(est_bytes):
    # Default scoped VMEM is 16 MiB (v5e) / 32 MiB (v6e, v7x); physical floor
    # across generations is 64 MiB (v7x).  Ask for 2x the estimated resident
    # (double-buffered) tiles, clamped into that window.
    return int(min(64 * 1024 * 1024, max(32 * 1024 * 1024, 2 * est_bytes)))


# ----------------------------------------------------------------------------
# Kernel 1: fused [LayerNorm] + Linear [+ GELU] [+ residual], tiled over
#           (rows, Nout) with both grid axes "parallel".
# ----------------------------------------------------------------------------
def _fused_linear_kernel(*refs, has_ln, has_bias, has_res, act):
    it = iter(refs)
    x_ref = next(it)
    if has_ln:
        g_ref = next(it)
        be_ref = next(it)
    w_ref = next(it)
    if has_bias:
        b_ref = next(it)
    if has_res:
        r_ref = next(it)
    o_ref = next(it)

    if has_ln:
        x = x_ref[...].astype(jnp.float32)       # LN statistics in f32
        mean = jnp.mean(x, axis=-1, keepdims=True)
        xc = x - mean
        var = jnp.mean(xc * xc, axis=-1, keepdims=True)
        inv = jax.lax.rsqrt(var + _LN_EPS)
        xn = (xc * inv * g_ref[...].astype(jnp.float32)
              + be_ref[...].astype(jnp.float32))
        x_mm = xn.astype(jnp.bfloat16)            # bf16 MXU operand
    else:
        x_mm = x_ref[...].astype(jnp.bfloat16)

    w = w_ref[...].astype(jnp.bfloat16)
    y = jnp.dot(x_mm, w, preferred_element_type=jnp.float32)   # f32 accumulate
    if has_bias:
        y = y + b_ref[...].astype(jnp.float32)
    if act == "gelu_tanh":
        # TODO(synk): erf-GELU not guaranteed to lower; tanh approx used.
        y = 0.5 * y * (1.0 + jnp.tanh(_GELU_C * (y + 0.044715 * y * y * y)))
    if has_res:
        y = y + r_ref[...].astype(jnp.float32)
    o_ref[...] = y.astype(o_ref.dtype)


def fused_linear(x2d, w_in_out, bias=None, gamma=None, beta=None,
                 residual=None, act=None, out_dtype=jnp.float32,
                 tile_m=512, tile_n=256):
    """x2d: (M, K), w_in_out: (K, Nout) bf16 -> (M, Nout) in out_dtype."""
    M, K = x2d.shape
    Nout = w_in_out.shape[1]

    # Row tile: 512 toward the HBM roofline when streaming large M; when M is
    # small, split it in two (keeping a multiple of 16 for bf16 blocks) so both
    # of v7x's TensorCores get a grid step.
    if M <= tile_m:
        TM = M // 2 if (M % 32 == 0) else M
    else:
        TM = tile_m
    # Column tile over Nout (second "parallel" axis): keeps the output /
    # residual blocks and the resident weight slice inside VMEM at production
    # widths (hidden = 4*dim) and the store lane-dense in 256 multiples.
    if Nout > tile_n and Nout % tile_n == 0:
        TN = tile_n
    else:
        TN = Nout
    grid = (pl.cdiv(M, TM), pl.cdiv(Nout, TN))

    has_ln = gamma is not None
    has_bias = bias is not None
    has_res = residual is not None

    args = [x2d]
    in_specs = [pl.BlockSpec((TM, K), lambda i, j: (i, 0))]
    est = 2 * _nbytes((TM, K), x2d.dtype)
    if has_ln:
        args += [gamma.reshape(1, K), beta.reshape(1, K)]
        in_specs += [pl.BlockSpec((1, K), lambda i, j: (0, 0)),
                     pl.BlockSpec((1, K), lambda i, j: (0, 0))]
        est += 4 * _nbytes((1, K), jnp.float32)
    args.append(w_in_out)
    # TODO(synk): pipeline_mode=pl.Buffered(1) on this constant-index weight
    #             spec would avoid double-buffering it; default kept for
    #             lowering safety.
    in_specs.append(pl.BlockSpec((K, TN), lambda i, j: (0, j)))
    est += 2 * _nbytes((K, TN), w_in_out.dtype)
    if has_bias:
        args.append(bias.reshape(1, Nout))
        in_specs.append(pl.BlockSpec((1, TN), lambda i, j: (0, j)))
        est += 2 * _nbytes((1, TN), bias.dtype)
    if has_res:
        args.append(residual)
        in_specs.append(pl.BlockSpec((TM, TN), lambda i, j: (i, j)))
        est += 2 * _nbytes((TM, TN), residual.dtype)
    est += 2 * _nbytes((TM, TN), out_dtype)

    kernel = functools.partial(_fused_linear_kernel, has_ln=has_ln,
                               has_bias=has_bias, has_res=has_res, act=act)
    return pl.pallas_call(
        kernel,
        out_shape=jax.ShapeDtypeStruct((M, Nout), out_dtype),
        grid=grid,
        in_specs=in_specs,
        out_specs=pl.BlockSpec((TM, TN), lambda i, j: (i, j)),
        compiler_params=pltpu.CompilerParams(
            dimension_semantics=("parallel", "parallel"),
            vmem_limit_bytes=_vmem_limit(est)),
    )(*args)


# ----------------------------------------------------------------------------
# Kernel 2: attention + output projection + first residual, one batch per step.
#   in : qkv slab (N, 3C) bf16, head-grouped columns [q_h | k_h | v_h] per head
#        (softmax scale already folded into the q columns of W_qkv),
#        x residual (N, C) f32, W_proj (C, C) bf16, b_proj (1, C) f32
#   out: x1 = x + (attn_out @ W_proj + b_proj)   (N, C) f32
#        attn map (H, N, N) f32 ("save")
# ----------------------------------------------------------------------------
def _attn_proj_kernel(qkv_ref, xres_ref, wproj_ref, bproj_ref,
                      x1_ref, attn_ref, acc_ref, *, num_heads, head_dim):
    D = head_dim
    # Seed the accumulator with residual + proj bias, then add each head's
    # projected contribution (no concat of head outputs, no attn_out HBM pass).
    acc_ref[...] = (xres_ref[...].astype(jnp.float32)
                    + bproj_ref[...].astype(jnp.float32))

    qkv = qkv_ref[...]        # (N, 3C) bf16, head-grouped
    wproj = wproj_ref[...]    # (C, C)  bf16

    # TODO(synk): for large H / N convert to a dynamic loop over heads (pl.ds)
    #             with flash-style query tiling; static unroll is fine here.
    for h in range(num_heads):
        base = 3 * D * h
        q = qkv[:, base:base + D]               # scale pre-folded into W_q
        k = qkv[:, base + D:base + 2 * D]
        v = qkv[:, base + 2 * D:base + 3 * D]

        # q @ k.T, bf16 operands, f32 accumulation
        s = jax.lax.dot_general(q, k, (((1,), (1,)), ((), ())),
                                preferred_element_type=jnp.float32)  # (N, N)
        s = s - jnp.max(s, axis=-1, keepdims=True)
        e = jnp.exp(s)
        p = e / jnp.sum(e, axis=-1, keepdims=True)   # exact f32 softmax (saved)
        attn_ref[h, :, :] = p.astype(attn_ref.dtype)

        o_h = jnp.dot(p.astype(jnp.bfloat16), v,
                      preferred_element_type=jnp.float32)            # (N, D)
        # Head h's columns of attn_out hit rows [h*D, (h+1)*D) of W_proj.
        acc_ref[...] += jnp.dot(o_h.astype(jnp.bfloat16),
                                wproj[h * D:(h + 1) * D, :],
                                preferred_element_type=jnp.float32)

    x1_ref[...] = acc_ref[...].astype(x1_ref.dtype)


def attention_proj(qkv_bn3c, x_bnc, w_proj, b_proj, num_heads):
    """qkv (B,N,3C) bf16 head-grouped, x (B,N,C) f32 -> (x1 (B,N,C) f32,
    attn (B,H,N,N) f32)."""
    B, N, C3 = qkv_bn3c.shape
    C = C3 // 3
    D = C // num_heads
    kernel = functools.partial(_attn_proj_kernel, num_heads=num_heads,
                               head_dim=D)
    est = (2 * _nbytes((N, C3), qkv_bn3c.dtype)
           + 2 * _nbytes((N, C), x_bnc.dtype)
           + 2 * _nbytes((C, C), w_proj.dtype)
           + 2 * _nbytes((1, C), jnp.float32)
           + 2 * _nbytes((N, C), jnp.float32)
           + 2 * _nbytes((num_heads, N, N), jnp.float32)
           + _nbytes((N, C), jnp.float32))
    return pl.pallas_call(
        kernel,
        out_shape=(
            jax.ShapeDtypeStruct((B, N, C), jnp.float32),
            jax.ShapeDtypeStruct((B, num_heads, N, N), jnp.float32),
        ),
        grid=(B,),
        in_specs=[
            pl.BlockSpec((None, N, C3), lambda b: (b, 0, 0)),
            pl.BlockSpec((None, N, C), lambda b: (b, 0, 0)),
            pl.BlockSpec((C, C), lambda b: (0, 0)),
            pl.BlockSpec((1, C), lambda b: (0, 0)),
        ],
        out_specs=(
            pl.BlockSpec((None, N, C), lambda b: (b, 0, 0)),
            pl.BlockSpec((None, num_heads, N, N), lambda b: (b, 0, 0, 0)),
        ),
        scratch_shapes=[pltpu.VMEM((N, C), jnp.float32)],
        compiler_params=pltpu.CompilerParams(
            dimension_semantics=("parallel",),
            vmem_limit_bytes=_vmem_limit(est)),
    )(qkv_bn3c, x_bnc, w_proj, b_proj.reshape(1, C))


# ----------------------------------------------------------------------------
# Block module (forward only), deterministic parameter init.
# ----------------------------------------------------------------------------
def _group_qkv_heads(a, num_heads, head_dim):
    """Reorder the last axis from [q | k | v] (each C wide, nn.Linear layout)
    into per-head contiguous [q_h, k_h, v_h] chunks of width 3*head_dim."""
    lead = a.shape[:-1]
    a3 = a.reshape(*lead, 3, num_heads, head_dim)
    return jnp.moveaxis(a3, -3, -2).reshape(*lead, 3 * num_heads * head_dim)


class Block:
    def __init__(self, dim, num_heads, mlp_ratio=4.0, qkv_bias=False, key=None):
        self.dim = dim
        self.num_heads = num_heads
        self.head_dim = dim // num_heads
        self.scale = self.head_dim ** (-0.5)
        self.qkv_bias = qkv_bias
        hidden = int(dim * mlp_ratio)
        self.hidden = hidden

        key = jax.random.PRNGKey(42) if key is None else key
        ks = jax.random.split(key, 10)

        def lin(kw, kb, fan_in, fan_out):
            bound = 1.0 / (fan_in ** 0.5)
            w = jax.random.uniform(kw, (fan_in, fan_out), jnp.float32, -bound, bound)
            b = jax.random.uniform(kb, (fan_out,), jnp.float32, -bound, bound)
            # Round weights through bf16 once so the kernels (bf16 resident
            # weights) and the f32 reference see identical weight values.
            return w.astype(jnp.bfloat16).astype(jnp.float32), b

        # LayerNorm affine params (non-trivial so the LN path is exercised)
        self.g1 = 1.0 + 0.1 * jax.random.normal(ks[0], (dim,), jnp.float32)
        self.be1 = 0.1 * jax.random.normal(ks[1], (dim,), jnp.float32)
        self.g2 = 1.0 + 0.1 * jax.random.normal(ks[2], (dim,), jnp.float32)
        self.be2 = 0.1 * jax.random.normal(ks[3], (dim,), jnp.float32)

        # f32 masters (used by the reference), standard [q | k | v] layout.
        self.w_qkv, b_qkv = lin(ks[4], ks[5], dim, 3 * dim)
        self.b_qkv = b_qkv if qkv_bias else None
        self.w_proj, self.b_proj = lin(ks[6], ks[7], dim, dim)
        self.w_fc1, self.b_fc1 = lin(ks[8], ks[9], dim, hidden)
        k10, k11 = jax.random.split(ks[9])
        self.w_fc2, self.b_fc2 = lin(k10, k11, hidden, dim)

        # Kernel-side weights: bf16 (native MXU path, half the weight traffic).
        # qkv is additionally head-grouped and has the softmax scale folded
        # into the q columns (free static transform).
        scale_vec = jnp.concatenate([
            jnp.full((dim,), self.scale, jnp.float32),
            jnp.ones((2 * dim,), jnp.float32)])
        self.w_qkv_k = _group_qkv_heads(self.w_qkv * scale_vec, num_heads,
                                        self.head_dim).astype(jnp.bfloat16)
        if qkv_bias:
            self.b_qkv_k = _group_qkv_heads(self.b_qkv * scale_vec, num_heads,
                                            self.head_dim)   # bias stays f32
        else:
            self.b_qkv_k = None
        self.w_proj_k = self.w_proj.astype(jnp.bfloat16)
        self.w_fc1_k = self.w_fc1.astype(jnp.bfloat16)
        self.w_fc2_k = self.w_fc2.astype(jnp.bfloat16)

    def __call__(self, x):
        B, N, C = x.shape
        x2 = x.reshape(B * N, C).astype(jnp.float32)

        # norm1 + qkv projection (fused); bf16 intermediate halves HBM traffic.
        qkv = fused_linear(x2, self.w_qkv_k, bias=self.b_qkv_k,
                           gamma=self.g1, beta=self.be1,
                           out_dtype=jnp.bfloat16)            # (B*N, 3C) bf16

        # attention + output projection + first residual, fused in one kernel
        # (no (B, N, C) attn_out round-trip through HBM).
        x1, attn = attention_proj(qkv.reshape(B, N, 3 * C),
                                  x.astype(jnp.float32),
                                  self.w_proj_k, self.b_proj, self.num_heads)
        x1_2 = x1.reshape(B * N, C)                            # f32 residual stream

        # norm2 + fc1 + GELU (fused); bf16 hidden activation
        h = fused_linear(x1_2, self.w_fc1_k, bias=self.b_fc1,
                         gamma=self.g2, beta=self.be2, act="gelu_tanh",
                         out_dtype=jnp.bfloat16)

        # fc2 + second residual (fused), f32 output
        out = fused_linear(h, self.w_fc2_k, bias=self.b_fc2, residual=x1_2,
                           out_dtype=jnp.float32)

        return out.reshape(B, N, C), attn


# ----------------------------------------------------------------------------
# Reference (pure jnp, f32) for sanity checking (same tanh-GELU formula)
# ----------------------------------------------------------------------------
def reference_forward(blk: Block, x):
    B, N, C = x.shape
    H, D = blk.num_heads, blk.head_dim

    def ln(z, g, b):
        m = z.mean(-1, keepdims=True)
        v = ((z - m) ** 2).mean(-1, keepdims=True)
        return (z - m) / jnp.sqrt(v + _LN_EPS) * g + b

    h1 = ln(x, blk.g1, blk.be1)
    qkv = h1.reshape(B * N, C) @ blk.w_qkv
    if blk.b_qkv is not None:
        qkv = qkv + blk.b_qkv
    qkv = jnp.transpose(qkv.reshape(B, N, 3, H, D), (2, 0, 3, 1, 4))
    q, k, v = qkv[0], qkv[1], qkv[2]
    s = jnp.einsum("bhnd,bhmd->bhnm", q, k) * blk.scale
    p = jax.nn.softmax(s, axis=-1)
    o = jnp.einsum("bhnm,bhmd->bhnd", p, v)
    o = jnp.transpose(o, (0, 2, 1, 3)).reshape(B, N, C)
    x1 = x + (o.reshape(B * N, C) @ blk.w_proj + blk.b_proj).reshape(B, N, C)

    h2 = ln(x1, blk.g2, blk.be2)
    hid = h2.reshape(B * N, C) @ blk.w_fc1 + blk.b_fc1
    hid = 0.5 * hid * (1.0 + jnp.tanh(_GELU_C * (hid + 0.044715 * hid ** 3)))
    out = x1 + (hid @ blk.w_fc2 + blk.b_fc2).reshape(B, N, C)
    return out, p


if __name__ == "__main__":
    # Small shapes consistent with the module: B=2, N=16 tokens, C=32 channels,
    # 4 heads (head_dim=8), mlp hidden = 128.
    B, N, C, H = 2, 16, 32, 4
    x = jax.random.normal(jax.random.PRNGKey(0), (B, N, C), dtype=jnp.float32)

    blk = Block(dim=C, num_heads=H, mlp_ratio=4.0, qkv_bias=False)

    y, save = blk(x)
    y = jax.block_until_ready(y)
    save = jax.block_until_ready(save)

    y_ref, save_ref = reference_forward(blk, x)
    assert y.shape == (B, N, C) and save.shape == (B, H, N, N)
    # Tolerances account for bf16 matmul operands / bf16 inter-kernel
    # activations (accumulation and LN/softmax/GELU statistics stay f32).
    assert jnp.allclose(y, y_ref, atol=3e-2, rtol=3e-2), \
        float(jnp.max(jnp.abs(y - y_ref)))
    assert jnp.allclose(save, save_ref, atol=1e-2, rtol=1e-2), \
        float(jnp.max(jnp.abs(save - save_ref)))

    print("KERNEL_OK")
</pallas_src>

<mosaic_0001>
module attributes {stable_mosaic.version = 11 : i64} {
  func.func @_fused_linear_kernel(%arg0: i32, %arg1: i32, %arg2: memref<16x32xf32, #tpu.memory_space<vmem>>, %arg3: memref<1x32xf32, #tpu.memory_space<vmem>>, %arg4: memref<1x32xf32, #tpu.memory_space<vmem>>, %arg5: memref<32x96xbf16, #tpu.memory_space<vmem>>, %arg6: memref<16x96xbf16, #tpu.memory_space<vmem>>) attributes {dimension_semantics = [#tpu.dimension_semantics<parallel>, #tpu.dimension_semantics<parallel>], iteration_bounds = array<i64: 2, 1>, scalar_prefetch = 0 : i64, scratch_operands = 0 : i64, tpu.core_type = #tpu.core_type<tc>, window_params = [{transform_indices = @transform_0, window_bounds = array<i64: 16, 32>}, {pipeline_mode = #tpu.pipeline_mode<synchronous>, transform_indices = @transform_1, window_bounds = array<i64: 1, 32>}, {pipeline_mode = #tpu.pipeline_mode<synchronous>, transform_indices = @transform_2, window_bounds = array<i64: 1, 32>}, {transform_indices = @transform_3, window_bounds = array<i64: 32, 96>}, {transform_indices = @transform_4, window_bounds = array<i64: 16, 96>}]} {
    %c0 = arith.constant 0 : index
    %c0_0 = arith.constant 0 : index
    %0 = vector.load %arg2[%c0, %c0_0] : memref<16x32xf32, #tpu.memory_space<vmem>>, vector<16x32xf32>
    %cst = arith.constant dense<0.000000e+00> : vector<16xf32>
    %1 = vector.multi_reduction <add>, %0, %cst [1] : vector<16x32xf32> to vector<16xf32>
    %2 = vector.shape_cast %1 : vector<16xf32> to vector<16x1xf32>
    %cst_1 = arith.constant 3.200000e+01 : f32
    %3 = vector.broadcast %cst_1 : f32 to vector<16x1xf32>
    %4 = arith.divf %2, %3 : vector<16x1xf32>
    %5 = vector.broadcast %4 : vector<16x1xf32> to vector<16x32xf32>
    %6 = arith.subf %0, %5 : vector<16x32xf32>
    %7 = arith.mulf %6, %6 : vector<16x32xf32>
    %cst_2 = arith.constant dense<0.000000e+00> : vector<16xf32>
    %8 = vector.multi_reduction <add>, %7, %cst_2 [1] : vector<16x32xf32> to vector<16xf32>
    %9 = vector.shape_cast %8 : vector<16xf32> to vector<16x1xf32>
    %cst_3 = arith.constant 3.200000e+01 : f32
    %10 = vector.broadcast %cst_3 : f32 to vector<16x1xf32>
    %11 = arith.divf %9, %10 : vector<16x1xf32>
    %cst_4 = arith.constant 9.99999974E-6 : f32
    %12 = vector.broadcast %cst_4 : f32 to vector<16x1xf32>
    %13 = arith.addf %11, %12 : vector<16x1xf32>
    %14 = math.rsqrt %13 : vector<16x1xf32>
    %15 = vector.broadcast %14 : vector<16x1xf32> to vector<16x32xf32>
    %16 = arith.mulf %6, %15 : vector<16x32xf32>
    %c0_5 = arith.constant 0 : index
    %c0_6 = arith.constant 0 : index
    %17 = vector.load %arg3[%c0_5, %c0_6] : memref<1x32xf32, #tpu.memory_space<vmem>>, vector<1x32xf32>
    %18 = vector.broadcast %17 : vector<1x32xf32> to vector<16x32xf32>
    %19 = arith.mulf %16, %18 : vector<16x32xf32>
    %c0_7 = arith.constant 0 : index
    %c0_8 = arith.constant 0 : index
    %20 = vector.load %arg4[%c0_7, %c0_8] : memref<1x32xf32, #tpu.memory_space<vmem>>, vector<1x32xf32>
    %21 = vector.broadcast %20 : vector<1x32xf32> to vector<16x32xf32>
    %22 = arith.addf %19, %21 : vector<16x32xf32>
    %23 = arith.truncf %22 : vector<16x32xf32> to vector<16x32xbf16>
    %c0_9 = arith.constant 0 : index
    %c0_10 = arith.constant 0 : index
    %24 = vector.load %arg5[%c0_9, %c0_10] : memref<32x96xbf16, #tpu.memory_space<vmem>>, vector<32x96xbf16>
    %cst_11 = arith.constant dense<0.000000e+00> : vector<16x96xf32>
    %25 = tpu.matmul %23, %24, %cst_11 {dimension_numbers = #tpu.dot_dimension_numbers<[1], [0], [0], [1], [0, 0, 1, 1], [], []>} : vector<16x32xbf16>, vector<32x96xbf16>, vector<16x96xf32> -> vector<16x96xf32>
    %26 = arith.truncf %25 : vector<16x96xf32> to vector<16x96xbf16>
    %c0_12 = arith.constant 0 : index
    %c0_13 = arith.constant 0 : index
    %27 = vector.load %arg6[%c0_12, %c0_13] : memref<16x96xbf16, #tpu.memory_space<vmem>>, vector<16x96xbf16>
    tpu.vector_store %arg6[%c0_12, %c0_13], %26 {strides = array<i32>} : memref<16x96xbf16, #tpu.memory_space<vmem>>, vector<16x96xbf16>,
    return
  }
  func.func @transform_0(%arg0: i32, %arg1: i32) -> (i32, i32) {
    %c0_i32 = arith.constant 0 : i32
    %c0_i32_0 = arith.constant 0 : i32
    return %arg0, %c0_i32 : i32, i32
  }
  func.func @transform_1(%arg0: i32, %arg1: i32) -> (i32, i32) {
    %c0_i32 = arith.constant 0 : i32
    %c0_i32_0 = arith.constant 0 : i32
    %c0_i32_1 = arith.constant 0 : i32
    return %c0_i32, %c0_i32_0 : i32, i32
  }
  func.func @transform_2(%arg0: i32, %arg1: i32) -> (i32, i32) {
    %c0_i32 = arith.constant 0 : i32
    %c0_i32_0 = arith.constant 0 : i32
    %c0_i32_1 = arith.constant 0 : i32
    return %c0_i32, %c0_i32_0 : i32, i32
  }
  func.func @transform_3(%arg0: i32, %arg1: i32) -> (i32, i32) {
    %c0_i32 = arith.constant 0 : i32
    %c0_i32_0 = arith.constant 0 : i32
    return %c0_i32, %arg1 : i32, i32
  }
  func.func @transform_4(%arg0: i32, %arg1: i32) -> (i32, i32) {
    %c0_i32 = arith.constant 0 : i32
    return %arg0, %arg1 : i32, i32
  }
}

</mosaic_0001>

<llo_original>
// kernel: tpu_custom_call.1
$region0: #{tpu_custom_call.1}
  #allocation0 [shape = 'u32[]', space=smem, size = 0x4, offset = 0x4, fixed_abs, tag = 'smem constant byte address 0x4 - core index']
  #allocation1 [shape = 'u32[144,128]{1,0:T(1,128)}', space=vmem, size = 0x12000, scoped, tag = 'internal scratch']
  %s0 = inlined_call_operand.hbm [shape: f32[32,32], index: 0, kind: input, shape index: {}]
  %s1 = inlined_call_operand.vmem [shape: f32[1,32], index: 1, kind: input, shape index: {}]
  %s2 = inlined_call_operand.vmem [shape: f32[1,32], index: 2, kind: input, shape index: {}]
  %s3 = inlined_call_operand.hbm [shape: bf16[32,96], index: 3, kind: input, shape index: {}]
  %s4 = inlined_call_operand.hbm [shape: bf16[32,96], index: 4, kind: output, shape index: {}]
  %s5 = sld [smem:[#allocation0]]
  $region57: #{tpu_custom_call.1} parent=0
    _
  %s7 = ssub.s32 1, %s5
  %s8 = scalar_select 0, %s7, %s5
  $region1: #{tpu_custom_call.1} parent=0
    #allocation2 [shape = 'u8[16384]{0}', space=vmem, size = 0x4000, scoped, tag = 'input window, operand 0']
    #allocation3 [shape = 's32[2]{0}', space=sflag, size = 0x8, scoped, tag = 'scoped memory for tpu_custom_call.1']
    #allocation4 [shape = 's32[2]{0}', space=sflag, size = 0x8, scoped, tag = 'scoped memory for tpu_custom_call.1']
    #allocation5 [shape = 'u8[8192]{0}', space=vmem, size = 0x2000, scoped, tag = 'input window, operand 3, single buffered']
    #allocation6 [shape = 's32[1]{0}', space=sflag, size = 0x4, scoped, tag = 'scoped memory for tpu_custom_call.1']
    #allocation7 [shape = 'u8[8192]{0}', space=vmem, size = 0x2000, scoped, tag = 'output window, operand 0']
    %9 = vsyncpa [#allocation3], 0
    %s10 = scalar_lea.sflag [#allocation3], 1
    %11 = vsyncpa %s10, 0
    %12 = vsyncpa [#allocation6], 0
    %13 = vsyncpa [#allocation4], 0
    %s14 = scalar_lea.sflag [#allocation4], 1
    %15 = vsyncpa %s14, 0
    loop: start=0, step=1, limit=4
    $region2: #{tpu_custom_call.1} parent=1 // loop_pre_header
      _
    $region3: #{tpu_custom_call.1} parent=1 // loop_header
      %s17 = sphi 0, %s21
      %p18 = scmp.ge.s32.totalorder %s17, 4
      %s24 = sphi 0, %s36
      %s25 = sphi 0, %s32
      %s26 = sphi 0, %s24
      %s27 = sphi 0, %s25
      %s28 = sphi 0, %s26
      %s29 = sphi 0, %s27
      %s39 = sphi 0, %s41
      %s42 = sphi 0, %s39
      %s43 = sphi 0, %s42
      %s59 = sphi 0, %s43
      %s63 = sphi 0, %s63
      %s65 = sphi 0, %s63
      %s66 = sphi 0, %s65
      %s80 = sphi 0, %s66
      %s84 = sphi 0, %s84
      %s86 = sphi 0, %s84
      %s87 = sphi 0, %s86
      %s101 = sphi 0, %s87
      %s107 = sphi 0, %s109
      %s110 = sphi 0, %s107
      %s111 = sphi 0, %s110
      %s127 = sphi 0, %s111
      %s135 = sphi 0, %s137
      %s138 = sphi 0, %s135
      %s139 = sphi 0, %s138
      %s155 = sphi 0, %s139
    $region4: #{tpu_custom_call.1} parent=1 // loop_header_branch
      %20 = sbr.rel (%p18) target = $region8
    $region5: #{tpu_custom_call.1} parent=1 // loop_body
      %s22 = ssub.s32 %s17, 1
      %s23 = ssub.s32 %s17, 2
      %s30 = sadd.s32 1, %s25
      %p31 = scmp.ge.s32.totalorder %s30, 1
      %s32 = scalar_select %p31, 0, %s30
      %s33 = sadd.s32 1, %s24
      %s34 = scalar_select %p31, %s33, %s24
      %p35 = scmp.ge.s32.totalorder %s34, 2
      %s36 = scalar_select %p35, 0, %s34
      %s37 = ssub.s32 %s24, %s36
      %p38 = scmp.eq.s32.totalorder %s37, 0
      %s40 = sadd.s32 %s39, 1
      %s41 = scalar_select %p38, %s39, %s40
      %p44 = pneg %p38
      %p45 = scmp.eq.s32.totalorder %s17, 1
      %p46 = por %p44, %p45
      %p47 = scmp.ne.s32.totalorder %s39, %s42
      %p48 = scmp.eq.s32.totalorder %s17, 0
      %p49 = por %p47, %p48
      %p50 = scmp.ne.s32.totalorder %s39, %s42
      %p51 = scmp.eq.s32.totalorder %s22, 1
      %p52 = por %p50, %p51
      %p53 = scmp.ne.s32.totalorder %s42, %s43
      %p54 = scmp.eq.s32.totalorder %s22, 0
      %p55 = por %p53, %p54
      %p56 = scmp.ne.s32.totalorder %s42, %s43
      %p57 = scmp.eq.s32.totalorder %s23, 1
      %p58 = por %p56, %p57
      %p60 = scmp.ne.s32.totalorder %s43, %s59
      %p61 = scmp.eq.s32.totalorder %s23, 0
      %p62 = por %p60, %p61
      %s64 = sadd.s32 %s63, 1
      %p67 = scmp.eq.s32.totalorder %s17, 1
      %p68 = scmp.ne.s32.totalorder %s63, %s65
      %p69 = scmp.eq.s32.totalorder %s17, 0
      %p70 = por %p68, %p69
      %p71 = scmp.ne.s32.totalorder %s63, %s65
      %p72 = scmp.eq.s32.totalorder %s22, 1
      %p73 = por %p71, %p72
      %p74 = scmp.ne.s32.totalorder %s65, %s66
      %p75 = scmp.eq.s32.totalorder %s22, 0
      %p76 = por %p74, %p75
      %p77 = scmp.ne.s32.totalorder %s65, %s66
      %p78 = scmp.eq.s32.totalorder %s23, 1
      %p79 = por %p77, %p78
      %p81 = scmp.ne.s32.totalorder %s66, %s80
      %p82 = scmp.eq.s32.totalorder %s23, 0
      %p83 = por %p81, %p82
      %s85 = sadd.s32 %s84, 1
      %p88 = scmp.eq.s32.totalorder %s17, 1
      %p89 = scmp.ne.s32.totalorder %s84, %s86
      %p90 = scmp.eq.s32.totalorder %s17, 0
      %p91 = por %p89, %p90
      %p92 = scmp.ne.s32.totalorder %s84, %s86
      %p93 = scmp.eq.s32.totalorder %s22, 1
      %p94 = por %p92, %p93
      %p95 = scmp.ne.s32.totalorder %s86, %s87
      %p96 = scmp.eq.s32.totalorder %s22, 0
      %p97 = por %p95, %p96
      %p98 = scmp.ne.s32.totalorder %s86, %s87
      %p99 = scmp.eq.s32.totalorder %s23, 1
      %p100 = por %p98, %p99
      %p102 = scmp.ne.s32.totalorder %s87, %s101
      %p103 = scmp.eq.s32.totalorder %s23, 0
      %p104 = por %p102, %p103
      %s105 = ssub.s32 %s25, %s32
      %p106 = scmp.eq.s32.totalorder %s105, 0
      %s108 = sadd.s32 %s107, 1
      %s109 = scalar_select %p106, %s107, %s108
      %p112 = pneg %p106
      %p113 = scmp.eq.s32.totalorder %s17, 1
      %p114 = por %p112, %p113
      %p115 = scmp.ne.s32.totalorder %s107, %s110
      %p116 = scmp.eq.s32.totalorder %s17, 0
      %p117 = por %p115, %p116
      %p118 = scmp.ne.s32.totalorder %s107, %s110
      %p119 = scmp.eq.s32.totalorder %s22, 1
      %p120 = por %p118, %p119
      %p121 = scmp.ne.s32.totalorder %s110, %s111
      %p122 = scmp.eq.s32.totalorder %s22, 0
      %p123 = por %p121, %p122
      %p124 = scmp.ne.s32.totalorder %s110, %s111
      %p125 = scmp.eq.s32.totalorder %s23, 1
      %p126 = por %p124, %p125
      %p128 = scmp.ne.s32.totalorder %s111, %s127
      %p129 = scmp.eq.s32.totalorder %s23, 0
      %p130 = por %p128, %p129
      %s131 = ssub.s32 %s24, %s36
      %s132 = ssub.s32 %s25, %s32
      %s133 = sor.u32 %s131, %s132
      %p134 = scmp.eq.s32.totalorder %s133, 0
      %s136 = sadd.s32 %s135, 1
      %s137 = scalar_select %p134, %s135, %s136
      %p140 = pneg %p134
      %p141 = scmp.eq.s32.totalorder %s17, 1
      %p142 = por %p140, %p141
      %p143 = scmp.ne.s32.totalorder %s135, %s138
      %p144 = scmp.eq.s32.totalorder %s17, 0
      %p145 = por %p143, %p144
      %p146 = scmp.ne.s32.totalorder %s135, %s138
      %p147 = scmp.eq.s32.totalorder %s22, 1
      %p148 = por %p146, %p147
      %p149 = scmp.ne.s32.totalorder %s138, %s139
      %p150 = scmp.eq.s32.totalorder %s22, 0
      %p151 = por %p149, %p150
      %p152 = scmp.ne.s32.totalorder %s138, %s139
      %p153 = scmp.eq.s32.totalorder %s23, 1
      %p154 = por %p152, %p153
      %p156 = scmp.ne.s32.totalorder %s139, %s155
      %p157 = scmp.eq.s32.totalorder %s23, 0
      %p158 = por %p156, %p157
      %p159 = scmp.le.s32.totalorder 1, %s17
      %p160 = scmp.lt.s32.totalorder %s17, 3
      %p161 = pnand %p159, %p160
      %p162 = pneg %p161
      // Predicated region
      $region9: #{tpu_custom_call.1} parent=5 // pred_check
        _
      $region10: #{tpu_custom_call.1} parent=5 // pred_check_branch
        %164 = sbr.rel (%p161) target = $region12
      $region11: #{tpu_custom_call.1} parent=5 // pred_region
        %s165 = ssub.s32 %s17, 1
        // Predicated region
        $region13: #{tpu_custom_call.1} parent=11 // pred_check
          %p166 = pneg %p76
        $region14: #{tpu_custom_call.1} parent=11 // pred_check_branch
          %168 = sbr.rel (%p166) target = $region16
        $region15: #{tpu_custom_call.1} parent=11 // pred_region
          _
        $region16: #{tpu_custom_call.1} parent=11 // pred_fallthru
          _
        // Predicated region
        $region17: #{tpu_custom_call.1} parent=11 // pred_check
          %p169 = pneg %p97
        $region18: #{tpu_custom_call.1} parent=11 // pred_check_branch
          %171 = sbr.rel (%p169) target = $region20
        $region19: #{tpu_custom_call.1} parent=11 // pred_region
          _
        $region20: #{tpu_custom_call.1} parent=11 // pred_fallthru
          _
        // Predicated region
        $region21: #{tpu_custom_call.1} parent=11 // pred_check
          %p172 = pneg %p123
        $region22: #{tpu_custom_call.1} parent=11 // pred_check_branch
          %174 = sbr.rel (%p172) target = $region24
        $region23: #{tpu_custom_call.1} parent=11 // pred_region
          %s176 = ssub.s32 256, 256
          %177 = vsyncadd [#allocation6], %s176
          %s178 = smul.addr %s27, 64
          %s179 = scalar_lea.hbm %s3, %s178
          %s180 = sshll.u32 [#allocation5], 4
          %s181 = int_to_ptr.vmem [resolvable:$true] %s180
          %186 = dma.hbm_to_vmem [thread:$0]  %s179, 256, %s181, [#allocation6], 64, 64, 4
        $region24: #{tpu_custom_call.1} parent=11 // pred_fallthru
          _
      $region12: #{tpu_custom_call.1} parent=5 // pred_fallthru
        _
      %p187 = scmp.lt.s32.totalorder %s17, 2
      // Predicated region
      $region25: #{tpu_custom_call.1} parent=5 // pred_check
        %p188 = pneg %p187
      $region26: #{tpu_custom_call.1} parent=5 // pred_check_branch
        %190 = sbr.rel (%p188) target = $region28
      $region27: #{tpu_custom_call.1} parent=5 // pred_region
        // Predicated region
        $region29: #{tpu_custom_call.1} parent=27 // pred_check
          %p191 = pneg %p49
        $region30: #{tpu_custom_call.1} parent=27 // pred_check_branch
          %193 = sbr.rel (%p191) target = $region32
        $region31: #{tpu_custom_call.1} parent=27 // pred_region
          %s194 = sand.u32 %s39, 1
          %s195 = scalar_lea.sflag [#allocation3], %s194
          %s196 = sand.u32 %s39, 1
          %s197 = smul.addr %s196, 16
          %s198 = scalar_lea.vmem [#allocation2], %s197
          %s199 = smul.u32 2, %s24
          %s201 = ssub.s32 256, 256
          %202 = vsyncadd %s195, %s201
          %s203 = smul.addr %s199, 128
          %s204 = scalar_lea.hbm %s0, %s203
          %s205 = sshll.u32 %s198, 4
          %s206 = int_to_ptr.vmem [resolvable:$true] %s205
          %211 = dma.hbm_to_vmem [thread:$0]  %s204, 256, %s206, %s195, 128, 128, 8
        $region32: #{tpu_custom_call.1} parent=27 // pred_fallthru
          _
      $region28: #{tpu_custom_call.1} parent=5 // pred_fallthru
        _
      %p212 = scmp.le.s32.totalorder 1, %s17
      %p213 = scmp.lt.s32.totalorder %s17, 3
      %p214 = pnand %p212, %p213
      %p215 = pneg %p214
      // Predicated region
      $region33: #{tpu_custom_call.1} parent=5 // pred_check
        _
      $region34: #{tpu_custom_call.1} parent=5 // pred_check_branch
        %217 = sbr.rel (%p214) target = $region36
      $region35: #{tpu_custom_call.1} parent=5 // pred_region
        %s218 = ssub.s32 %s17, 1
        %s219 = sand.u32 %s42, 1
        %s220 = scalar_lea.sflag [#allocation3], %s219
        %s221 = sand.u32 %s42, 1
        %s222 = smul.addr %s221, 16
        %s223 = scalar_lea.vmem [#allocation2], %s222
        // Predicated region
        $region37: #{tpu_custom_call.1} parent=35 // pred_check
          %p224 = pneg %p55
        $region38: #{tpu_custom_call.1} parent=35 // pred_check_branch
          %226 = sbr.rel (%p224) target = $region40
        $region39: #{tpu_custom_call.1} parent=35 // pred_region
          %227 = dma.done %s220, 256
        $region40: #{tpu_custom_call.1} parent=35 // pred_fallthru
          _
        // Predicated region
        $region41: #{tpu_custom_call.1} parent=35 // pred_check
          %p228 = pneg %p123
        $region42: #{tpu_custom_call.1} parent=35 // pred_check_branch
          %230 = sbr.rel (%p228) target = $region44
        $region43: #{tpu_custom_call.1} parent=35 // pred_region
          %231 = dma.done [#allocation6], 256
        $region44: #{tpu_custom_call.1} parent=35 // pred_fallthru
          _
        %s232 = sand.u32 %s42, 1
        %s233 = scalar_lea.sflag [#allocation3], %s232
        %s234 = sand.u32 %s42, 1
        %s235 = smul.addr %s234, 16
        %s236 = scalar_lea.vmem [#allocation2], %s235
        %p237 = pneg %p55
        %p238 = pneg %p52
        %p239 = pneg %p76
        %p240 = pneg %p73
        %p241 = pneg %p97
        %p242 = pneg %p94
        %p243 = pneg %p123
        %p244 = pneg %p120
        %p245 = pneg %p151
        %p246 = pneg %p148
        %s247 = sand.u32 %s138, 1
        %s248 = scalar_lea.sflag [#allocation4], %s247
        %s249 = sand.u32 %s138, 1
        %s250 = smul.addr %s249, 8
        %s251 = scalar_lea.vmem [#allocation7], %s250
        %s252 = smul.u32 2, %s26
        %s253 = smul.u32 2, %s26
        %v255 = vld [vmem:[%s223] sm:$0xff]
        %v256 = vld [vmem:[%s223 + $0x8] sm:$0xff]
        %vm257 = vcmask 261120
        %v258 = vsel %vm257, %v255, 0.0
        %259 = vadd.xlane.f32.xlu0 %v258
        %v260 = vpop.xlane.xlu0 %259
        %v261 = vsel %vm257, %v256, 0.0
        %262 = vadd.xlane.f32.xlu0 %v261
        %v263 = vpop.xlane.xlu0 %262
        %v264 = vrcp.pop 32.0
        %v265 = vmul.f32 %v260, %v264
        %v266 = vmul.f32 %v263, %v264
        %v267 = vsub.f32 %v255, %v265
        %v268 = vsub.f32 %v256, %v266
        %v269 = vmul.f32 %v267, %v267
        %v270 = vmul.f32 %v268, %v268
        %v271 = vsel %vm257, %v269, 0.0
        %272 = vadd.xlane.f32.xlu0 %v271
        %v273 = vpop.xlane.xlu0 %272
        %v274 = vsel %vm257, %v270, 0.0
        %275 = vadd.xlane.f32.xlu0 %v274
        %v276 = vpop.xlane.xlu0 %275
        %v277 = vmul.f32 %v273, %v264
        %v278 = vmul.f32 %v276, %v264
        %v279 = vadd.f32 %v277, 1e-05
        %v280 = vadd.f32 %v278, 1e-05
        %v281 = vrsqrt.pop %v279
        %v282 = vrsqrt.pop %v280
        %v283 = vmul.f32 %v267, %v281
        %v284 = vmul.f32 %v268, %v282
        %v285 = vld [vmem:[%s1] sm:$0x1]
        %v287 = vlaneseq
        %v288 = vshrl.u32 %v287, 7
        %v289 = vsub.s32 0, %v288
        %v290 = vrot.slane %v285, %v289
        %v292 = vmul.f32 %v283, %v290
        %v293 = vmul.f32 %v284, %v290
        %v294 = vld [vmem:[%s2] sm:$0x1]
        %v296 = vlaneseq
        %v297 = vshrl.u32 %v296, 7
        %v298 = vsub.s32 0, %v297
        %v299 = vrot.slane %v294, %v298
        %v301 = vadd.f32 %v292, %v299
        %v302 = vadd.f32 %v293, %v299
        %v303 = vpack.c.bf16 %v302, %v301
        %v304 = vld [vmem:[#allocation5] sm:$0xf]
        %v305 = vld [vmem:[#allocation5 + $0x4] sm:$0xf]
        %v306 = vld [vmem:[#allocation5 + $0x8] sm:$0xf]
        %v307 = vld [vmem:[#allocation5 + $0xc] sm:$0xf]
        %v312 = vunpack.c.l.b16 %v304
        %v313 = vunpack.c.l.b16 %v305
        %v314 = vunpack.c.l.b16 %v306
        %v315 = vunpack.c.l.b16 %v307
        %v316 = vpack.c.b16 %v313, %v312
        %v317 = vpack.c.b16 %v315, %v314
        %v321 = vsel %vm257, %v303, 0
        %323 = vmatprep.subr.bf16.mxu0 0
        %324 = vmatpush1.bf16.msra.mxu0 0
        %325 = vmatprep.subr.bf16.mxu0 0
        %326 = vmatpush1.bf16.msra.mxu0 0
        %327 = vmatprep.subr.bf16.mxu0 0
        %328 = vmatpush1.bf16.msra.mxu0 0
        %329 = vmatprep.subr.bf16.mxu0 0
        %330 = vmatpush1.bf16.msra.mxu0 0
        %331 = vmatprep.subr.bf16.mxu0 0
        %332 = vmatpush1.bf16.msra.mxu0 0
        %333 = vmatprep.subr.bf16.mxu0 0
        %334 = vmatpush1.bf16.msra.mxu0 0
        %335 = vmatprep.subr.bf16.mxu0 0
        %336 = vmatpush1.bf16.msra.mxu0 %v317
        %337 = vmatprep.subr.bf16.mxu0 0
        %338 = vmatpush1.bf16.msra.mxu0 %v316
        %339 = vmatprep.subr.bf16.mxu0 0
        %340 = vmatpush2.bf16.msra.mxu0 0
        %341 = vmatprep.subr.bf16.mxu0 0
        %342 = vmatpush2.bf16.msra.mxu0 0
        %343 = vmatprep.subr.bf16.mxu0 0
        %344 = vmatpush2.bf16.msra.mxu0 0
        %345 = vmatprep.subr.bf16.mxu0 0
        %346 = vmatpush2.bf16.msra.mxu0 0
        %347 = vmatprep.subr.bf16.mxu0 0
        %348 = vmatpush2.bf16.msra.mxu0 0
        %349 = vmatprep.subr.bf16.mxu0 0
        %350 = vmatpush2.bf16.msra.mxu0 0
        %351 = vmatprep.subr.bf16.mxu0 0
        %352 = vmatpush2.bf16.msra.mxu0 0
        %353 = vmatprep.subr.bf16.mxu0 0
        %354 = vmatpush2.bf16.msra.mxu0 0
        %355 = vmatprep.mubr.bf16.mxu0 0
        %356 = vmatmul.mubr.bf16.gmra.mxu0 %v321
        %v357 = vpop.f32.mrf.mxu0
        %v358 = vadd.f32 0.0, %v357
        %v359 = vpop.f32.mrf.mxu0
        %v360 = vpop.f32.mrf.mxu0
        %v361 = vadd.f32 0.0, %v360
        %v362 = vpop.f32.mrf.mxu0
        %363 = vdwg.mxu0
        %v364 = vpack.c.bf16 %v361, %v358
        %v366 = vunpack.c.l.b16 %v364
        %v367 = vunpack.c.h.b16 %v364
        %v368 = vpack.c.b16 %v366, %v366
        %v369 = vpack.c.b16 %v367, %v367
        %vm372 = vcmask 781312
        %373 = vst.msk [vmem:[%s251] sm:$0xf] %vm372, %v368
        %374 = vst.msk [vmem:[%s251 + $0x4] sm:$0xf] %vm372, %v369
        %s375 = sand.u32 %s138, 1
        %s376 = scalar_lea.sflag [#allocation4], %s375
        %s377 = sand.u32 %s138, 1
        %s378 = smul.addr %s377, 8
        %s379 = scalar_lea.vmem [#allocation7], %s378
        // Predicated region
        $region45: #{tpu_custom_call.1} parent=35 // pred_check
          %p380 = pneg %p148
        $region46: #{tpu_custom_call.1} parent=35 // pred_check_branch
          %382 = sbr.rel (%p380) target = $region48
        $region47: #{tpu_custom_call.1} parent=35 // pred_region
          %s383 = smul.u32 2, %s26
          %s385 = ssub.s32 128, 128
          %386 = vsyncadd %s376, %s385
          %s387 = sadd.s32 %s27, %s383
          %s388 = smul.addr %s387, 64
          %s389 = scalar_lea.hbm %s4, %s388
          %s390 = sshll.u32 %s379, 4
          %s391 = int_to_ptr.vmem [resolvable:$true] %s390
          %396 = dma.vmem_to_hbm [thread:$0]  %s391, 128, %s389, %s376, 64, 64, 4
        $region48: #{tpu_custom_call.1} parent=35 // pred_fallthru
          _
      $region36: #{tpu_custom_call.1} parent=5 // pred_fallthru
        _
      %p397 = scmp.le.s32.totalorder 2, %s17
      // Predicated region
      $region49: #{tpu_custom_call.1} parent=5 // pred_check
        %p398 = pneg %p397
      $region50: #{tpu_custom_call.1} parent=5 // pred_check_branch
        %400 = sbr.rel (%p398) target = $region52
      $region51: #{tpu_custom_call.1} parent=5 // pred_region
        %s401 = ssub.s32 %s17, 2
        // Predicated region
        $region53: #{tpu_custom_call.1} parent=51 // pred_check
          %p402 = pneg %p154
        $region54: #{tpu_custom_call.1} parent=51 // pred_check_branch
          %404 = sbr.rel (%p402) target = $region56
        $region55: #{tpu_custom_call.1} parent=51 // pred_region
          %s405 = sand.u32 %s139, 1
          %s406 = scalar_lea.sflag [#allocation4], %s405
          %s407 = sand.u32 %s139, 1
          %s408 = smul.addr %s407, 8
          %s409 = scalar_lea.vmem [#allocation7], %s408
          %410 = dma.done %s406, 128
        $region56: #{tpu_custom_call.1} parent=51 // pred_fallthru
          _
      $region52: #{tpu_custom_call.1} parent=5 // pred_fallthru
        _
    $region6: #{tpu_custom_call.1} parent=1 // loop_footer
      %s21 = sadd.s32 1, %s17
    $region7: #{tpu_custom_call.1} parent=1 // loop_footer_branch
      %16 = sbr.rel target = $region3
    $region8: #{tpu_custom_call.1} parent=1 // loop_exit
      _
    %411 = vsyncpa [#allocation3], 1
    %s412 = scalar_lea.sflag [#allocation3], 1
    %413 = vsyncpa %s412, 1
    %414 = vsyncpa [#allocation6], 1
    %415 = vsyncpa [#allocation4], 1
    %s416 = scalar_lea.sflag [#allocation4], 1
    %417 = vsyncpa %s416, 1

</llo_original>
